<compile_context>
chip_gen: v6e
topology: v6e:2x2x1
jax: 0.10.0
libtpu: 0.0.40
codegen_flags: <defaults>
</compile_context>

<pallas_src>
import functools

import numpy as np
import jax
import jax.numpy as jnp
from jax.experimental import pallas as pl
from jax.experimental.pallas import tpu as pltpu


def clogit_fwd_kernel(bounds_ref, first_ref, x_ref, w_ref, o_ref, *,
                      tile_n, max_segs_per_tile, num_strata):
    """One N-tile of the forward pass: linear logits + per-stratum softmax.

    bounds_ref : [S+1] i32 SMEM (scalar prefetch) - stratum row offsets, bounds[S]=N
    first_ref  : [num_tiles] i32 SMEM (scalar prefetch) - first stratum of each tile
    x_ref      : [TILE_N, D] f32 VMEM - natural row-major block of X
    w_ref      : [D, 1] f32 VMEM - linear weight (bias dropped: shift-invariant)
    o_ref      : [1, TILE_N] f32 VMEM - lane-dense probabilities for this tile
    """
    i = pl.program_id(0)
    neg_inf = jnp.float32(-jnp.inf)

    # Linear layer: in-kernel 32-wide transpose (XLU) of the natural block, then a
    # VPU broadcast-multiply + sublane reduce.  Result is lane-dense [1, TILE_N].
    xt = x_ref[...].T                                               # [D, TILE_N]
    logits = jnp.sum(xt * w_ref[...], axis=0, keepdims=True)        # [1, TILE_N]

    # Global row index (of X) held by each lane of this tile.
    col = i * tile_n + jax.lax.broadcasted_iota(jnp.int32, (1, tile_n), 1)

    first = first_ref[i]

    # Pass 1: per-stratum max, broadcast back per column.  Each column belongs to
    # at most one stratum, so a masked SUM of per-stratum maxima == select.
    # Columns beyond N (pad of the last tile) match nothing and stay masked.
    members = []
    row_max = jnp.zeros((1, tile_n), jnp.float32)
    for s in range(max_segs_per_tile):
        gs = jnp.minimum(first + s, num_strata)            # clamp -> empty stratum
        start = bounds_ref[gs]
        end = bounds_ref[jnp.minimum(gs + 1, num_strata)]
        member = (col >= start) & (col < end)               # [1, TILE_N]
        members.append(member)
        seg_max = jnp.max(jnp.where(member, logits, neg_inf), axis=1, keepdims=True)
        row_max = row_max + jnp.where(member, seg_max, 0.0)

    e = jnp.exp(logits - row_max)                           # [1, TILE_N]

    # Pass 2: per-stratum sum of exp, broadcast back as the denominator.
    denom = jnp.zeros((1, tile_n), jnp.float32)
    for member in members:
        seg_sum = jnp.sum(jnp.where(member, e, 0.0), axis=1, keepdims=True)
        denom = denom + jnp.where(member, seg_sum, 0.0)

    # Guard pad / uncovered lanes (denom == 0); their stores are masked off anyway.
    denom = jnp.where(denom > 0.0, denom, 1.0)
    # Exact divide (the approx reciprocal broke per-stratum normalization ~1e-3).
    o_ref[...] = (e / denom).astype(o_ref.dtype)


def clogit_forward(x, w, strata, *, tile_n=None):
    """x: [N, D] f32 row-major, w: [D, 1] f32, strata: list of contiguous stratum
    lengths with sum(strata) == N.  Returns [N] f32 per-stratum softmax probs.

    The nn.Linear bias is intentionally not used: softmax over each stratum is
    shift-invariant, so a scalar bias cancels and the output matches PyTorch."""
    n, d = x.shape
    strata = [int(s) for s in strata]
    if sum(strata) != n:
        raise ValueError("sum(strata) must equal the number of rows of X")
    num_strata = len(strata)
    bounds = np.concatenate([[0], np.cumsum(strata)]).astype(np.int32)   # [S+1]

    if tile_n is None:
        # Lane-aligned tile.  At scale 8K-32K lanes keeps the ~0.35us per-step
        # overhead <5% while the X block (4*D*tile_n bytes, double-buffered)
        # stays well inside v7x's 64 MiB VMEM.
        tile_n = int(min(16384, max(128, pl.next_power_of_2(int(n)))))
    if tile_n % 128 != 0:
        raise ValueError("tile_n must be a multiple of 128")
    num_tiles = int(pl.cdiv(n, tile_n))

    # Stratum-aligned tiling is enforced, not assumed: every stratum must live
    # entirely inside one tile so its softmax reduction sees all of its rows.
    for s in range(num_strata):
        lo, hi = int(bounds[s]), int(bounds[s + 1])
        if hi > lo and (lo // tile_n) != ((hi - 1) // tile_n):
            raise ValueError(
                f"stratum {s} (rows [{lo}, {hi})) straddles a {tile_n}-row tile "
                "boundary; choose a different tile_n")

    starts = bounds[:-1]
    tile_starts = np.arange(num_tiles, dtype=np.int64) * tile_n
    first_seg = np.searchsorted(starts, tile_starts, side="left").astype(np.int32)
    seg_hi = np.searchsorted(starts, tile_starts + tile_n, side="left")
    max_segs_per_tile = max(1, int(np.max(seg_hi - first_seg)))

    x = jnp.asarray(x, dtype=jnp.float32)
    w_col = jnp.asarray(w, dtype=jnp.float32).reshape(d, 1)

    kernel = functools.partial(
        clogit_fwd_kernel,
        tile_n=tile_n,
        max_segs_per_tile=max_segs_per_tile,
        num_strata=num_strata,
    )

    # Rough VMEM budget: double-buffered X block + [1, TILE_N] intermediates,
    # with 2x headroom, clamped to stay inside v7x's 64 MiB physical VMEM.
    x_block_bytes = 2 * tile_n * d * 4
    work_bytes = (4 * max_segs_per_tile + 16) * tile_n * 4
    vmem_limit = int(min(48 * 2**20, max(16 * 2**20, 2 * (x_block_bytes + work_bytes))))

    out = pl.pallas_call(
        kernel,
        out_shape=jax.ShapeDtypeStruct((1, n), jnp.float32),
        grid_spec=pltpu.PrefetchScalarGridSpec(
            num_scalar_prefetch=2,
            grid=(num_tiles,),
            in_specs=[
                # Natural row-major [TILE_N, D] blocks of X: contiguous DMA, and
                # no HBM-side materialization of X^T in the wrapper.
                pl.BlockSpec((tile_n, d), lambda i, bounds, first: (i, 0)),
                # Tiny weight vector, replicated to every tile.
                pl.BlockSpec((d, 1), lambda i, bounds, first: (0, 0)),
            ],
            out_specs=pl.BlockSpec((1, tile_n), lambda i, bounds, first: (0, i)),
        ),
        compiler_params=pltpu.CompilerParams(
            # Tiles are independent (stratum-aligned), so the N axis is parallel:
            # megacore-sharded across v7x's two TensorCores, free on v5e/v6e.
            dimension_semantics=("parallel",),
            vmem_limit_bytes=vmem_limit,
        ),
    )(jnp.asarray(bounds), jnp.asarray(first_seg), x, w_col)
    return out[0]                                # [N], mirrors torch's .squeeze()


def _reference_forward(x, w, b, strata):
    """Pure-JAX reference of the PyTorch forward (with bias), for correctness."""
    logits = jnp.dot(x, w, precision=jax.lax.Precision.HIGHEST)[:, 0] + b[0, 0]
    pieces = []
    ix = 0
    for s in strata:
        pieces.append(jax.nn.softmax(logits[ix:ix + s], axis=0))
        ix += s
    return jnp.concatenate(pieces, axis=0)


def _run_case(key, n, d, strata, tile_n=None):
    kx, kw, kb = jax.random.split(key, 3)
    x = jax.random.normal(kx, (n, d), dtype=jnp.float32)

    # torch.nn.Linear(in=D, out=1) init: U(-1/sqrt(D), 1/sqrt(D)) for weight/bias.
    bound = 1.0 / np.sqrt(d)
    w = jax.random.uniform(kw, (d, 1), dtype=jnp.float32, minval=-bound, maxval=bound)
    b = jax.random.uniform(kb, (1, 1), dtype=jnp.float32, minval=-bound, maxval=bound)

    y_hat = clogit_forward(x, w, strata, tile_n=tile_n)
    y_hat = jax.block_until_ready(y_hat)

    # Matches the PyTorch-style reference (which includes the bias) ...
    y_ref = _reference_forward(x, w, b, strata)
    np.testing.assert_allclose(np.asarray(y_hat), np.asarray(y_ref),
                               rtol=1e-4, atol=1e-5)
    # ... and each stratum's probabilities sum to 1 (exact divide).
    ix = 0
    for s in strata:
        np.testing.assert_allclose(float(jnp.sum(y_hat[ix:ix + s])), 1.0, rtol=1e-4)
        ix += s


if __name__ == "__main__":
    key = jax.random.PRNGKey(0)
    k1, k2 = jax.random.split(key)

    # Small case from the module spec: N=8 samples, D=32 features, strata [3, 5].
    _run_case(k1, 8, 32, [3, 5])

    # Multi-tile case exercising the grid / scalar prefetch / partial last tile:
    # 300 rows, tile_n=128 -> 3 tiles, strata aligned to tile boundaries.
    _run_case(k2, 300, 32, [60, 68, 128, 44], tile_n=128)

    print("KERNEL_OK")
</pallas_src>

<mosaic_0001>
module attributes {stable_mosaic.version = 11 : i64} {
  func.func @clogit_fwd_kernel(%arg0: i32, %arg1: memref<3xi32, #tpu.memory_space<smem>>, %arg2: memref<1xi32, #tpu.memory_space<smem>>, %arg3: memref<128x32xf32, #tpu.memory_space<vmem>>, %arg4: memref<32x1xf32, #tpu.memory_space<vmem>>, %arg5: memref<1x128xf32, #tpu.memory_space<vmem>>) attributes {dimension_semantics = [#tpu.dimension_semantics<parallel>], iteration_bounds = array<i64: 1>, scalar_prefetch = 2 : i64, scratch_operands = 0 : i64, tpu.core_type = #tpu.core_type<tc>, window_params = [{transform_indices = @transform_0, window_bounds = array<i64: 128, 32>}, {pipeline_mode = #tpu.pipeline_mode<synchronous>, transform_indices = @transform_1, window_bounds = array<i64: 32, 1>}, {transform_indices = @transform_2, window_bounds = array<i64: 1, 128>}]} {
    %c0 = arith.constant 0 : index
    %c0_0 = arith.constant 0 : index
    %0 = vector.load %arg3[%c0, %c0_0] : memref<128x32xf32, #tpu.memory_space<vmem>>, vector<128x32xf32>
    %1 = tpu.transpose %0, [1, 0] : vector<128x32xf32> -> vector<32x128xf32>
    %c0_1 = arith.constant 0 : index
    %c0_2 = arith.constant 0 : index
    %2 = vector.load %arg4[%c0_1, %c0_2] : memref<32x1xf32, #tpu.memory_space<vmem>>, vector<32x1xf32>
    %3 = vector.broadcast %2 : vector<32x1xf32> to vector<32x128xf32>
    %4 = arith.mulf %1, %3 : vector<32x128xf32>
    %cst = arith.constant dense<0.000000e+00> : vector<128xf32>
    %5 = vector.multi_reduction <add>, %4, %cst [0] : vector<32x128xf32> to vector<128xf32>
    %6 = vector.shape_cast %5 : vector<128xf32> to vector<1x128xf32>
    %c128_i32 = arith.constant 128 : i32
    %7 = arith.muli %arg0, %c128_i32 : i32
    %8 = tpu.iota {dimensions = array<i32: 1>} : vector<1x128xi32>
    %9 = vector.broadcast %7 : i32 to vector<1x128xi32>
    %10 = arith.addi %9, %8 : vector<1x128xi32>
    %11 = arith.index_cast %arg0 : i32 to index
    %12 = memref.load %arg2[%11] : memref<1xi32, #tpu.memory_space<smem>>
    %cst_3 = arith.constant 0.000000e+00 : f32
    %13 = vector.broadcast %cst_3 : f32 to vector<1x128xf32>
    %c0_i32 = arith.constant 0 : i32
    %14 = arith.addi %12, %c0_i32 : i32
    %c2_i32 = arith.constant 2 : i32
    %15 = arith.minsi %14, %c2_i32 : i32
    %16 = arith.index_cast %15 : i32 to index
    %17 = memref.load %arg1[%16] : memref<3xi32, #tpu.memory_space<smem>>
    %c1_i32 = arith.constant 1 : i32
    %18 = arith.addi %15, %c1_i32 : i32
    %c2_i32_4 = arith.constant 2 : i32
    %19 = arith.minsi %18, %c2_i32_4 : i32
    %20 = arith.index_cast %19 : i32 to index
    %21 = memref.load %arg1[%20] : memref<3xi32, #tpu.memory_space<smem>>
    %22 = vector.broadcast %17 : i32 to vector<1x128xi32>
    %23 = arith.cmpi sge, %10, %22 : vector<1x128xi32>
    %24 = vector.broadcast %21 : i32 to vector<1x128xi32>
    %25 = arith.cmpi slt, %10, %24 : vector<1x128xi32>
    %26 = arith.andi %23, %25 : vector<1x128xi1>
    %cst_5 = arith.constant 0xFF800000 : f32
    %27 = vector.broadcast %cst_5 : f32 to vector<1x128xf32>
    %28 = arith.select %26, %6, %27 : vector<1x128xi1>, vector<1x128xf32>
    %cst_6 = arith.constant dense<0xFF800000> : vector<1xf32>
    %29 = vector.multi_reduction <maximumf>, %28, %cst_6 [1] : vector<1x128xf32> to vector<1xf32>
    %30 = vector.shape_cast %29 : vector<1xf32> to vector<1x1xf32>
    %cst_7 = arith.constant 0.000000e+00 : f32
    %31 = vector.shape_cast %30 : vector<1x1xf32> to vector<1x1xf32>
    %32 = vector.broadcast %31 : vector<1x1xf32> to vector<1x128xf32>
    %33 = vector.broadcast %cst_7 : f32 to vector<1x128xf32>
    %34 = arith.select %26, %32, %33 : vector<1x128xi1>, vector<1x128xf32>
    %35 = arith.addf %13, %34 : vector<1x128xf32>
    %c1_i32_8 = arith.constant 1 : i32
    %36 = arith.addi %12, %c1_i32_8 : i32
    %c2_i32_9 = arith.constant 2 : i32
    %37 = arith.minsi %36, %c2_i32_9 : i32
    %38 = arith.index_cast %37 : i32 to index
    %39 = memref.load %arg1[%38] : memref<3xi32, #tpu.memory_space<smem>>
    %c1_i32_10 = arith.constant 1 : i32
    %40 = arith.addi %37, %c1_i32_10 : i32
    %c2_i32_11 = arith.constant 2 : i32
    %41 = arith.minsi %40, %c2_i32_11 : i32
    %42 = arith.index_cast %41 : i32 to index
    %43 = memref.load %arg1[%42] : memref<3xi32, #tpu.memory_space<smem>>
    %44 = vector.broadcast %39 : i32 to vector<1x128xi32>
    %45 = arith.cmpi sge, %10, %44 : vector<1x128xi32>
    %46 = vector.broadcast %43 : i32 to vector<1x128xi32>
    %47 = arith.cmpi slt, %10, %46 : vector<1x128xi32>
    %48 = arith.andi %45, %47 : vector<1x128xi1>
    %cst_12 = arith.constant 0xFF800000 : f32
    %49 = vector.broadcast %cst_12 : f32 to vector<1x128xf32>
    %50 = arith.select %48, %6, %49 : vector<1x128xi1>, vector<1x128xf32>
    %cst_13 = arith.constant dense<0xFF800000> : vector<1xf32>
    %51 = vector.multi_reduction <maximumf>, %50, %cst_13 [1] : vector<1x128xf32> to vector<1xf32>
    %52 = vector.shape_cast %51 : vector<1xf32> to vector<1x1xf32>
    %cst_14 = arith.constant 0.000000e+00 : f32
    %53 = vector.shape_cast %52 : vector<1x1xf32> to vector<1x1xf32>
    %54 = vector.broadcast %53 : vector<1x1xf32> to vector<1x128xf32>
    %55 = vector.broadcast %cst_14 : f32 to vector<1x128xf32>
    %56 = arith.select %48, %54, %55 : vector<1x128xi1>, vector<1x128xf32>
    %57 = arith.addf %35, %56 : vector<1x128xf32>
    %58 = arith.subf %6, %57 : vector<1x128xf32>
    %59 = math.exp %58 : vector<1x128xf32>
    %cst_15 = arith.constant 0.000000e+00 : f32
    %60 = vector.broadcast %cst_15 : f32 to vector<1x128xf32>
    %cst_16 = arith.constant 0.000000e+00 : f32
    %61 = vector.broadcast %cst_16 : f32 to vector<1x128xf32>
    %62 = arith.select %26, %59, %61 : vector<1x128xi1>, vector<1x128xf32>
    %cst_17 = arith.constant dense<0.000000e+00> : vector<1xf32>
    %63 = vector.multi_reduction <add>, %62, %cst_17 [1] : vector<1x128xf32> to vector<1xf32>
    %64 = vector.shape_cast %63 : vector<1xf32> to vector<1x1xf32>
    %cst_18 = arith.constant 0.000000e+00 : f32
    %65 = vector.shape_cast %64 : vector<1x1xf32> to vector<1x1xf32>
    %66 = vector.broadcast %65 : vector<1x1xf32> to vector<1x128xf32>
    %67 = vector.broadcast %cst_18 : f32 to vector<1x128xf32>
    %68 = arith.select %26, %66, %67 : vector<1x128xi1>, vector<1x128xf32>
    %69 = arith.addf %60, %68 : vector<1x128xf32>
    %cst_19 = arith.constant 0.000000e+00 : f32
    %70 = vector.broadcast %cst_19 : f32 to vector<1x128xf32>
    %71 = arith.select %48, %59, %70 : vector<1x128xi1>, vector<1x128xf32>
    %cst_20 = arith.constant dense<0.000000e+00> : vector<1xf32>
    %72 = vector.multi_reduction <add>, %71, %cst_20 [1] : vector<1x128xf32> to vector<1xf32>
    %73 = vector.shape_cast %72 : vector<1xf32> to vector<1x1xf32>
    %cst_21 = arith.constant 0.000000e+00 : f32
    %74 = vector.shape_cast %73 : vector<1x1xf32> to vector<1x1xf32>
    %75 = vector.broadcast %74 : vector<1x1xf32> to vector<1x128xf32>
    %76 = vector.broadcast %cst_21 : f32 to vector<1x128xf32>
    %77 = arith.select %48, %75, %76 : vector<1x128xi1>, vector<1x128xf32>
    %78 = arith.addf %69, %77 : vector<1x128xf32>
    %cst_22 = arith.constant 0.000000e+00 : f32
    %79 = vector.broadcast %cst_22 : f32 to vector<1x128xf32>
    %80 = arith.cmpf ogt, %78, %79 : vector<1x128xf32>
    %cst_23 = arith.constant 1.000000e+00 : f32
    %81 = vector.broadcast %cst_23 : f32 to vector<1x128xf32>
    %82 = arith.select %80, %78, %81 : vector<1x128xi1>, vector<1x128xf32>
    %83 = arith.divf %59, %82 : vector<1x128xf32>
    %c0_24 = arith.constant 0 : index
    %c0_25 = arith.constant 0 : index
    %84 = vector.load %arg5[%c0_24, %c0_25] : memref<1x128xf32, #tpu.memory_space<vmem>>, vector<1x128xf32>
    tpu.vector_store %arg5[%c0_24, %c0_25], %83 {strides = array<i32>} : memref<1x128xf32, #tpu.memory_space<vmem>>, vector<1x128xf32>,
    return
  }
  func.func @transform_0(%arg0: i32, %arg1: memref<3xi32, #tpu.memory_space<smem>>, %arg2: memref<1xi32, #tpu.memory_space<smem>>) -> (i32, i32) {
    %c0_i32 = arith.constant 0 : i32
    %c0_i32_0 = arith.constant 0 : i32
    return %arg0, %c0_i32 : i32, i32
  }
  func.func @transform_1(%arg0: i32, %arg1: memref<3xi32, #tpu.memory_space<smem>>, %arg2: memref<1xi32, #tpu.memory_space<smem>>) -> (i32, i32) {
    %c0_i32 = arith.constant 0 : i32
    %c0_i32_0 = arith.constant 0 : i32
    %c0_i32_1 = arith.constant 0 : i32
    return %c0_i32, %c0_i32_0 : i32, i32
  }
  func.func @transform_2(%arg0: i32, %arg1: memref<3xi32, #tpu.memory_space<smem>>, %arg2: memref<1xi32, #tpu.memory_space<smem>>) -> (i32, i32) {
    %c0_i32 = arith.constant 0 : i32
    %c0_i32_0 = arith.constant 0 : i32
    return %c0_i32, %arg0 : i32, i32
  }
}

</mosaic_0001>

<llo_original>
// kernel: tpu_custom_call.1
$region0: #{tpu_custom_call.1}
  #allocation0 [shape = 'u32[]', space=smem, size = 0x4, offset = 0x4, fixed_abs, tag = 'smem constant byte address 0x4 - core index']
  #allocation1 [shape = 'u32[144,128]{1,0:T(1,128)}', space=vmem, size = 0x12000, scoped, tag = 'internal scratch']
  #allocation2 [shape = 's32[1]{0}', space=sflag, size = 0x4, scoped, tag = 'scoped memory for tpu_custom_call.1']
  #allocation3 [shape = 'u8[512]{0}', space=smem, size = 0x200, scoped, tag = 'prefetched SMEM operand 0']
  #allocation4 [shape = 's32[1]{0:T(128)S(6)}', space=smem, size = 0x200, scoped, tag = 'prefetched SMEM operand 1']
  %s0 = inlined_call_operand.vmem [shape: s32[3], index: 0, kind: input, shape index: {}]
  %s1 = inlined_call_operand.<no memory space> [shape: s32[1], index: 1, kind: input, shape index: {}]
  %s2 = inlined_call_operand.vmem [shape: f32[8,32], index: 2, kind: input, shape index: {}]
  %s3 = inlined_call_operand.vmem [shape: f32[32,1], index: 3, kind: input, shape index: {}]
  %s4 = inlined_call_operand.hbm [shape: f32[1,8], index: 4, kind: output, shape index: {}]
  %s5 = sld [smem:[#allocation0]]
  $region18: #{tpu_custom_call.1} parent=0
    _
  %s7 = ssub.s32 1, %s5
  %s8 = scalar_select 0, %s7, %s5
  %s9 = sshll.u32 %s0, 4
  %s10 = int_to_ptr.vmem [resolvable:$true] %s9
  %12 = dma.vmem_to_smem %s10, 16, [#allocation3], [#allocation2]
  %13 = sst [smem:[#allocation4]] %s1
  %14 = dma.done [#allocation2], 16
  %15 = sfence
  $region1: #{tpu_custom_call.1} parent=0
    #allocation5 [shape = 'u8[512]{0}', space=vmem, size = 0x400, scoped, tag = 'output window, operand 0, single buffered']
    #allocation6 [shape = 's32[1]{0}', space=sflag, size = 0x4, scoped, tag = 'scoped memory for tpu_custom_call.1']
    %16 = vsyncpa [#allocation6], 0
    // Predicated region
    $region2: #{tpu_custom_call.1} parent=1 // pred_check
      _
    $region3: #{tpu_custom_call.1} parent=1 // pred_check_branch
      %18 = sbr.rel (0) target = $region5
    $region4: #{tpu_custom_call.1} parent=1 // pred_region
      _
    $region5: #{tpu_custom_call.1} parent=1 // pred_fallthru
      _
    // Predicated region
    $region6: #{tpu_custom_call.1} parent=1 // pred_check
      _
    $region7: #{tpu_custom_call.1} parent=1 // pred_check_branch
      %20 = sbr.rel (0) target = $region9
    $region8: #{tpu_custom_call.1} parent=1 // pred_region
      _
    $region9: #{tpu_custom_call.1} parent=1 // pred_fallthru
      _
    %v21 = vld [vmem:[%s2] sm:$0xff]
    %v22 = vld [vmem:[%s2 + $0x8] sm:$0xff]
    %v23 = vld [vmem:[%s2 + $0x10] sm:$0xff]
    %v24 = vld [vmem:[%s2 + $0x18] sm:$0xff]
    %v25 = vld [vmem:[%s2 + $0x20] sm:$0xff]
    %v26 = vld [vmem:[%s2 + $0x28] sm:$0xff]
    %v27 = vld [vmem:[%s2 + $0x30] sm:$0xff]
    %v28 = vld [vmem:[%s2 + $0x38] sm:$0xff]
    %v29 = vld [vmem:[%s2 + $0x40] sm:$0xff]
    %v30 = vld [vmem:[%s2 + $0x48] sm:$0xff]
    %v31 = vld [vmem:[%s2 + $0x50] sm:$0xff]
    %v32 = vld [vmem:[%s2 + $0x58] sm:$0xff]
    %v33 = vld [vmem:[%s2 + $0x60] sm:$0xff]
    %v34 = vld [vmem:[%s2 + $0x68] sm:$0xff]
    %v35 = vld [vmem:[%s2 + $0x70] sm:$0xff]
    %v36 = vld [vmem:[%s2 + $0x78] sm:$0xff]
    %37 = vxpose.xlu0.b32.start [1/16] %v21, 128
    %38 = vxpose.xlu0.b32.cont [2/16] %v22, 128
    %39 = vxpose.xlu0.b32.cont [3/16] %v23, 128
    %40 = vxpose.xlu0.b32.cont [4/16] %v24, 128
    %41 = vxpose.xlu0.b32.cont [5/16] %v25, 128
    %42 = vxpose.xlu0.b32.cont [6/16] %v26, 128
    %43 = vxpose.xlu0.b32.cont [7/16] %v27, 128
    %44 = vxpose.xlu0.b32.cont [8/16] %v28, 128
    %45 = vxpose.xlu0.b32.cont [9/16] %v29, 128
    %46 = vxpose.xlu0.b32.cont [10/16] %v30, 128
    %47 = vxpose.xlu0.b32.cont [11/16] %v31, 128
    %48 = vxpose.xlu0.b32.cont [12/16] %v32, 128
    %49 = vxpose.xlu0.b32.cont [13/16] %v33, 128
    %50 = vxpose.xlu0.b32.cont [14/16] %v34, 128
    %51 = vxpose.xlu0.b32.cont [15/16] %v35, 128
    %52 = vxpose.xlu0.b32.end [16/16] %v36, 128
    %v53 = vpop.trf.xlu0
    %v54 = vpop.trf.xlu0
    %v55 = vpop.trf.xlu0
    %v56 = vpop.trf.xlu0
    %v57 = vpop.trf.xlu0
    %v58 = vpop.trf.xlu0
    %v59 = vpop.trf.xlu0
    %v60 = vpop.trf.xlu0
    %v61 = vpop.trf.xlu0
    %v62 = vpop.trf.xlu0
    %v63 = vpop.trf.xlu0
    %v64 = vpop.trf.xlu0
    %v65 = vpop.trf.xlu0
    %v66 = vpop.trf.xlu0
    %v67 = vpop.trf.xlu0
    %v68 = vpop.trf.xlu0
    %v69 = vld [vmem:[%s3] sm:$0xff]
    %v70 = vld [vmem:[%s3 + $0x8] sm:$0xff]
    %v71 = vld [vmem:[%s3 + $0x10] sm:$0xff]
    %v72 = vld [vmem:[%s3 + $0x18] sm:$0xff]
    %74 = vset.pattern.permute.xlu0 0
    %75 = vperm.xlu0 %74, %v69
    %v76 = vpop.permute.xlu0 %75
    %79 = vset.pattern.permute.xlu0 0
    %80 = vperm.xlu0 %79, %v70
    %v81 = vpop.permute.xlu0 %80
    %84 = vset.pattern.permute.xlu0 0
    %85 = vperm.xlu0 %84, %v71
    %v86 = vpop.permute.xlu0 %85
    %89 = vset.pattern.permute.xlu0 0
    %90 = vperm.xlu0 %89, %v72
    %v91 = vpop.permute.xlu0 %90
    %v93 = vmul.f32 %v53, %v76
    %v94 = vmul.f32 %v54, %v81
    %v95 = vmul.f32 %v55, %v86
    %v96 = vmul.f32 %v56, %v91
    %v97 = vadd.f32 %v93, %v94
    %v98 = vadd.f32 %v97, %v95
    %v99 = vadd.f32 %v98, %v96
    %v100 = vrot.slane %v99, 4
    %v101 = vadd.f32 %v99, %v100
    %v102 = vrot.slane %v101, 2
    %v103 = vadd.f32 %v101, %v102
    %v104 = vrot.slane %v103, 1
    %v105 = vadd.f32 %v103, %v104
    %s106 = smul.u32 0, 128
    %v107 = vlaneseq
    %v108 = vand.u32 %v107, 127
    %v109 = vstv %s106
    %v110 = vadd.s32 %v109, %v108
    %s111 = sld [smem:[#allocation4]]
    %p112 = scmp.lt.s32.totalorder %s111, 2
    %s113 = scalar_select %p112, %s111, 2
    %s114 = sld [smem:[#allocation3 + %s113]]
    %s115 = sadd.s32 %s113, 1
    %p116 = scmp.lt.s32.totalorder %s115, 2
    %s117 = scalar_select %p116, %s115, 2
    %s118 = sld [smem:[#allocation3 + %s117]]
    %v119 = vstv %s114
    %vm120 = vcmp.ge.s32.totalorder %v110, %v119
    %v121 = vstv %s118
    %vm122 = vcmp.lt.s32.totalorder %v110, %v121
    %vm123 = vmand %vm120, %vm122
    %v124 = vsel %vm123, %v105, -inf
    %125 = vmax.xlane.f32.xlu0 %v124
    %v126 = vpop.xlane.xlu0 %125
    %v127 = vsel %vm123, %v126, 0.0
    %v128 = vadd.f32 %v127, 0.0
    %s129 = sadd.s32 %s111, 1
    %p130 = scmp.lt.s32.totalorder %s129, 2
    %s131 = scalar_select %p130, %s129, 2
    %s132 = sld [smem:[#allocation3 + %s131]]
    %s133 = sadd.s32 %s131, 1
    %p134 = scmp.lt.s32.totalorder %s133, 2
    %s135 = scalar_select %p134, %s133, 2
    %s136 = sld [smem:[#allocation3 + %s135]]
    %v137 = vstv %s132
    %vm138 = vcmp.ge.s32.totalorder %v110, %v137
    %v139 = vstv %s136
    %vm140 = vcmp.lt.s32.totalorder %v110, %v139
    %vm141 = vmand %vm138, %vm140
    %v142 = vsel %vm141, %v105, -inf
    %143 = vmax.xlane.f32.xlu0 %v142
    %v144 = vpop.xlane.xlu0 %143
    %v145 = vsel %vm141, %v144, 0.0
    %v146 = vadd.f32 %v128, %v145
    %v147 = vsub.f32 %v105, %v146
    %v148 = vmul.f32 %v147, 1.442695
    %v149 = vpow.pop %v148
    %v150 = vsel %vm123, %v149, 0.0
    %151 = vadd.xlane.f32.xlu0 %v150
    %v152 = vpop.xlane.xlu0 %151
    %v153 = vsel %vm123, %v152, 0.0
    %v154 = vadd.f32 %v153, 0.0
    %v155 = vsel %vm141, %v149, 0.0
    %156 = vadd.xlane.f32.xlu0 %v155
    %v157 = vpop.xlane.xlu0 %156
    %v158 = vsel %vm141, %v157, 0.0
    %v159 = vadd.f32 %v154, %v158
    %vm160 = vcmp.gt.f32.partialorder %v159, 0.0
    %v161 = vsel %vm160, %v159, 1.0
    %v162 = vrcp.pop %v161
    %v163 = vmul.f32 %v149, %v162
    %164 = vst [vmem:[#allocation5] sm:$0x1] %v163
    // Predicated region
    $region10: #{tpu_custom_call.1} parent=1 // pred_check
      _
    $region11: #{tpu_custom_call.1} parent=1 // pred_check_branch
      %166 = sbr.rel (0) target = $region13
    $region12: #{tpu_custom_call.1} parent=1 // pred_region
      %s168 = ssub.s32 16, 16
      %169 = vsyncadd [#allocation6], %s168
      %s171 = sshll.u32 [#allocation5], 4
      %s172 = int_to_ptr.vmem [resolvable:$true] %s171
      %174 = dma.vmem_to_hbm [thread:$0]  %s172, 16, %s4, [#allocation6]
    $region13: #{tpu_custom_call.1} parent=1 // pred_fallthru
      _
    // Predicated region
    $region14: #{tpu_custom_call.1} parent=1 // pred_check
      _
    $region15: #{tpu_custom_call.1} parent=1 // pred_check_branch
      %176 = sbr.rel (0) target = $region17
    $region16: #{tpu_custom_call.1} parent=1 // pred_region
      %177 = dma.done [#allocation6], 16
    $region17: #{tpu_custom_call.1} parent=1 // pred_fallthru
      _
    %178 = vsyncpa [#allocation6], 1

</llo_original>
